<compile_context>
chip_gen: v5e
topology: v5e:2x2
jax: 0.10.0
libtpu: 0.0.40
codegen_flags: <defaults>
</compile_context>

<pallas_src>
import functools

import jax
import jax.numpy as jnp
from jax.experimental import pallas as pl
from jax.experimental.pallas import tpu as pltpu

EPS = 1e-5  # nn.LayerNorm default eps


# ----------------------------------------------------------------------------
# Kernels
# ----------------------------------------------------------------------------
def _ln_single_pass_kernel(x_ref, w_ref, o_ref, *, inv_c, inv_l):
    # x_ref: (bt, L, Cp) tile; w_ref: (1, Cp).
    x = x_ref[...].astype(jnp.float32)
    mean = jnp.sum(x, axis=-1, keepdims=True) * inv_c                 # (bt,L,1)
    var = jnp.maximum(
        jnp.sum(x * x, axis=-1, keepdims=True) * inv_c - mean * mean, 0.0)
    y = (x - mean) * jax.lax.rsqrt(var + EPS)                         # (bt,L,Cp)
    seq_mean = jnp.sum(y, axis=1, keepdims=True) * inv_l              # (bt,1,Cp)
    w = w_ref[...].astype(jnp.float32)                                # (1,Cp)
    o_ref[...] = ((y - seq_mean) * w).astype(o_ref.dtype)             # one store


def _ln_two_phase_kernel(x_ref, w_ref, o_ref, ssum_ref, *, inv_c, inv_l,
                         l_real, lt):
    # x_ref: (1, lt, Cp) tile; w_ref: (1, Cp); ssum_ref: (1, 1, Cp) f32 scratch.
    phase = pl.program_id(1)
    li = pl.program_id(2)

    x = x_ref[...].astype(jnp.float32)
    mean = jnp.sum(x, axis=-1, keepdims=True) * inv_c
    var = jnp.maximum(
        jnp.sum(x * x, axis=-1, keepdims=True) * inv_c - mean * mean, 0.0)
    y = (x - mean) * jax.lax.rsqrt(var + EPS)                         # (1,lt,Cp)
    # TODO(synk): optionally cache per-row mean/inv_std in a VMEM scratch so
    # phase 1 skips the re-reduction (saves XLU work on compute-bound parts).

    @pl.when((phase == 0) & (li == 0))
    def _():
        ssum_ref[...] = jnp.zeros_like(ssum_ref)

    @pl.when(phase == 0)
    def _():
        if l_real % lt != 0:
            # Mask padded rows of the last partial L tile out of the seq-sum.
            rows = li * lt + jax.lax.broadcasted_iota(jnp.int32, (1, lt, 1), 1)
            y_sum = jnp.where(rows < l_real, y, 0.0)
        else:
            y_sum = y
        ssum_ref[...] += jnp.sum(y_sum, axis=1, keepdims=True)        # (1,1,Cp)

    @pl.when(phase == 1)
    def _():
        w = w_ref[...].astype(jnp.float32)
        seq_mean = ssum_ref[...] * inv_l                              # (1,1,Cp)
        o_ref[...] = ((y - seq_mean) * w).astype(o_ref.dtype)


# ----------------------------------------------------------------------------
# Wrapper
# ----------------------------------------------------------------------------
def _vmem_capacity_bytes():
    try:
        info = pltpu.get_tpu_info()
        return int(getattr(info, "vmem_capacity_bytes", 64 << 20))
    except Exception:
        return 64 << 20   # conservative default (v7x-class per-TC VMEM)


def my_layernorm(x, weight, bias=None, *, force_two_phase=False, max_lt=None):
    """x: (B, L, C); weight, bias: (C,).  Returns (B, L, C) in x.dtype.

    `bias` is accepted for API parity with nn.LayerNorm but unused: it cancels
    exactly in x_hat - mean_L(x_hat).  `force_two_phase` / `max_lt` are
    test/tuning hooks for the L-tiled path.
    """
    del bias
    B, L, C = x.shape
    in_bytes = x.dtype.itemsize

    # Lane-dense channels: pad C up to a multiple of 128 with zeros.
    c_pad = -(-C // 128) * 128
    if c_pad != C:
        x_in = jnp.pad(x, ((0, 0), (0, 0), (0, c_pad - C)))
        w_in = jnp.pad(weight, (0, c_pad - C)).reshape(1, c_pad)
    else:
        x_in = x
        w_in = weight.reshape(1, c_pad)

    inv_c = 1.0 / C       # real C, not padded -> stats stay exact
    inv_l = 1.0 / L

    # Generation-aware budgets: v5e/v6e have 128 MiB VMEM + 1 TC, v7x has
    # 64 MiB per TC + 2 TCs.
    cap = _vmem_capacity_bytes()
    big_vmem = cap >= (96 << 20)
    target_tile = (4 << 20) if big_vmem else (2 << 20)      # input bytes / step
    single_budget = (96 << 20) if big_vmem else (40 << 20)  # fast-path gate
    limit_cap = (110 << 20) if big_vmem else (48 << 20)

    # Per-batch-row VMEM cost of the fast path: double-buffered in + out tiles
    # (x dtype) plus ~3 live f32 temporaries.
    row_vmem = L * c_pad * (4 * in_bytes + 12)
    row_in_bytes = L * c_pad * in_bytes

    if not force_two_phase and row_vmem <= single_budget:
        # -------- fast path: one (bt, L, Cp) slab per grid step --------
        bt = max(1, min(B, target_tile // max(1, row_in_bytes)))
        bt = max(1, min(bt, single_budget // row_vmem))
        if not big_vmem and B >= 2:
            bt = min(bt, -(-B // 2))      # >=2 grid steps so both v7x TCs work
        n_bt = -(-B // bt)                # cdiv; partial last batch block is OK

        needed = bt * row_vmem + 2 * c_pad * 4
        vmem_limit = int(min(max(needed + (16 << 20), 32 << 20), limit_cap))

        out_p = pl.pallas_call(
            functools.partial(_ln_single_pass_kernel, inv_c=inv_c, inv_l=inv_l),
            out_shape=jax.ShapeDtypeStruct((B, L, c_pad), x.dtype),
            grid_spec=pltpu.PrefetchScalarGridSpec(
                num_scalar_prefetch=0,
                grid=(n_bt,),
                in_specs=[
                    pl.BlockSpec((bt, L, c_pad), lambda g: (g, 0, 0)),
                    pl.BlockSpec((1, c_pad), lambda g: (0, 0)),
                ],
                out_specs=pl.BlockSpec((bt, L, c_pad), lambda g: (g, 0, 0)),
            ),
            compiler_params=pltpu.CompilerParams(
                dimension_semantics=("parallel",),
                vmem_limit_bytes=vmem_limit,
            ),
        )(x_in, w_in)
    else:
        # -------- two-phase path: grid (B, 2, L_tiles), bt = 1 --------
        lt = max(1, target_tile // max(1, c_pad * in_bytes))
        if max_lt is not None:
            lt = min(lt, max_lt)
        if lt >= L:
            lt = L
        else:
            lt = min(max(8, (lt // 8) * 8), L)   # sublane dim multiple of 8
        n_lt = -(-L // lt)

        needed = lt * c_pad * (4 * in_bytes + 12) + 10 * c_pad * 4
        vmem_limit = int(min(max(needed + (16 << 20), 32 << 20), limit_cap))
        # TODO(synk): add a C-tiled variant for channel counts where even one
        # (8, C) row tile exceeds the VMEM budget.

        out_p = pl.pallas_call(
            functools.partial(_ln_two_phase_kernel, inv_c=inv_c, inv_l=inv_l,
                              l_real=L, lt=lt),
            out_shape=jax.ShapeDtypeStruct((B, L, c_pad), x.dtype),
            grid_spec=pltpu.PrefetchScalarGridSpec(
                num_scalar_prefetch=0,
                grid=(B, 2, n_lt),
                in_specs=[
                    pl.BlockSpec((1, lt, c_pad), lambda b, p, l: (b, l, 0)),
                    pl.BlockSpec((1, c_pad), lambda b, p, l: (0, 0)),
                ],
                # Phase 0 never writes; pinning the output block index at
                # (b, 0, 0) during phase 0 means the buffer is only flushed
                # after phase 1 has written it -> exactly one lane-dense
                # writeback per block, no garbage stores.
                out_specs=pl.BlockSpec((1, lt, c_pad),
                                       lambda b, p, l: (b, l * p, 0)),
                scratch_shapes=[pltpu.VMEM((1, 1, c_pad), jnp.float32)],
            ),
            compiler_params=pltpu.CompilerParams(
                dimension_semantics=("parallel", "arbitrary", "arbitrary"),
                vmem_limit_bytes=vmem_limit,
            ),
        )(x_in, w_in)

    return out_p[..., :C] if c_pad != C else out_p


# ----------------------------------------------------------------------------
# Reference + self-test
# ----------------------------------------------------------------------------
def _reference(x, weight, bias):
    xf = x.astype(jnp.float32)
    mean = jnp.mean(xf, axis=-1, keepdims=True)
    var = jnp.mean((xf - mean) ** 2, axis=-1, keepdims=True)
    x_hat = (xf - mean) * jax.lax.rsqrt(var + EPS) * weight + bias
    out = x_hat - jnp.mean(x_hat, axis=1, keepdims=True)
    return out.astype(x.dtype)


if __name__ == "__main__":
    key = jax.random.PRNGKey(0)
    cases = [
        # (B, L, C), wrapper kwargs
        ((4, 16, 128), {}),                                        # fast, lane-dense
        ((2, 8, 32), {}),                                          # fast, C padded
        ((3, 16, 128), dict(force_two_phase=True, max_lt=8)),      # two-phase, 2 L tiles
        ((2, 12, 64), dict(force_two_phase=True, max_lt=8)),       # two-phase, partial L tile + C pad
    ]
    for (B, L, C), kwargs in cases:
        key, kx, kw, kb = jax.random.split(key, 4)
        x = jax.random.normal(kx, (B, L, C), dtype=jnp.float32)
        weight = 1.0 + 0.1 * jax.random.normal(kw, (C,), dtype=jnp.float32)
        bias = 0.1 * jax.random.normal(kb, (C,), dtype=jnp.float32)

        out = my_layernorm(x, weight, bias, **kwargs)
        jax.block_until_ready(out)

        ref = _reference(x, weight, bias)
        assert out.shape == x.shape, (out.shape, x.shape)
        err = float(jnp.max(jnp.abs(out - ref)))
        assert jnp.allclose(out, ref, atol=1e-4, rtol=1e-4), ((B, L, C), err)

    print("KERNEL_OK")
</pallas_src>

<mosaic_0001>
module attributes {stable_mosaic.version = 11 : i64} {
  func.func @_ln_single_pass_kernel(%arg0: i32, %arg1: memref<2x16x128xf32, #tpu.memory_space<vmem>>, %arg2: memref<1x128xf32, #tpu.memory_space<vmem>>, %arg3: memref<2x16x128xf32, #tpu.memory_space<vmem>>) attributes {dimension_semantics = [#tpu.dimension_semantics<parallel>], iteration_bounds = array<i64: 2>, scalar_prefetch = 0 : i64, scratch_operands = 0 : i64, tpu.core_type = #tpu.core_type<tc>, window_params = [{transform_indices = @transform_0, window_bounds = array<i64: 2, 16, 128>}, {pipeline_mode = #tpu.pipeline_mode<synchronous>, transform_indices = @transform_1, window_bounds = array<i64: 1, 128>}, {transform_indices = @transform_2, window_bounds = array<i64: 2, 16, 128>}]} {
    %c0 = arith.constant 0 : index
    %c0_0 = arith.constant 0 : index
    %c0_1 = arith.constant 0 : index
    %0 = vector.load %arg1[%c0, %c0_0, %c0_1] : memref<2x16x128xf32, #tpu.memory_space<vmem>>, vector<2x16x128xf32>
    %cst = arith.constant dense<0.000000e+00> : vector<2x16xf32>
    %1 = vector.multi_reduction <add>, %0, %cst [2] : vector<2x16x128xf32> to vector<2x16xf32>
    %2 = vector.shape_cast %1 : vector<2x16xf32> to vector<2x16x1xf32>
    %cst_2 = arith.constant 7.812500e-03 : f32
    %3 = vector.broadcast %cst_2 : f32 to vector<2x16x1xf32>
    %4 = arith.mulf %2, %3 : vector<2x16x1xf32>
    %5 = arith.mulf %0, %0 : vector<2x16x128xf32>
    %cst_3 = arith.constant dense<0.000000e+00> : vector<2x16xf32>
    %6 = vector.multi_reduction <add>, %5, %cst_3 [2] : vector<2x16x128xf32> to vector<2x16xf32>
    %7 = vector.shape_cast %6 : vector<2x16xf32> to vector<2x16x1xf32>
    %cst_4 = arith.constant 7.812500e-03 : f32
    %8 = vector.broadcast %cst_4 : f32 to vector<2x16x1xf32>
    %9 = arith.mulf %7, %8 : vector<2x16x1xf32>
    %10 = arith.mulf %4, %4 : vector<2x16x1xf32>
    %11 = arith.subf %9, %10 : vector<2x16x1xf32>
    %cst_5 = arith.constant 0.000000e+00 : f32
    %12 = vector.broadcast %cst_5 : f32 to vector<2x16x1xf32>
    %13 = arith.maximumf %11, %12 : vector<2x16x1xf32>
    %14 = vector.broadcast %4 : vector<2x16x1xf32> to vector<2x16x128xf32>
    %15 = arith.subf %0, %14 : vector<2x16x128xf32>
    %cst_6 = arith.constant 9.99999974E-6 : f32
    %16 = vector.broadcast %cst_6 : f32 to vector<2x16x1xf32>
    %17 = arith.addf %13, %16 : vector<2x16x1xf32>
    %18 = math.rsqrt %17 : vector<2x16x1xf32>
    %19 = vector.broadcast %18 : vector<2x16x1xf32> to vector<2x16x128xf32>
    %20 = arith.mulf %15, %19 : vector<2x16x128xf32>
    %cst_7 = arith.constant dense<0.000000e+00> : vector<2x128xf32>
    %21 = vector.multi_reduction <add>, %20, %cst_7 [1] : vector<2x16x128xf32> to vector<2x128xf32>
    %22 = vector.shape_cast %21 : vector<2x128xf32> to vector<2x1x128xf32>
    %cst_8 = arith.constant 6.250000e-02 : f32
    %23 = vector.broadcast %cst_8 : f32 to vector<2x1x128xf32>
    %24 = arith.mulf %22, %23 : vector<2x1x128xf32>
    %c0_9 = arith.constant 0 : index
    %c0_10 = arith.constant 0 : index
    %25 = vector.load %arg2[%c0_9, %c0_10] : memref<1x128xf32, #tpu.memory_space<vmem>>, vector<1x128xf32>
    %26 = vector.broadcast %24 : vector<2x1x128xf32> to vector<2x16x128xf32>
    %27 = arith.subf %20, %26 : vector<2x16x128xf32>
    %28 = vector.shape_cast %25 : vector<1x128xf32> to vector<1x1x128xf32>
    %29 = vector.broadcast %28 : vector<1x1x128xf32> to vector<2x16x128xf32>
    %30 = arith.mulf %27, %29 : vector<2x16x128xf32>
    %c0_11 = arith.constant 0 : index
    %c0_12 = arith.constant 0 : index
    %c0_13 = arith.constant 0 : index
    %31 = vector.load %arg3[%c0_11, %c0_12, %c0_13] : memref<2x16x128xf32, #tpu.memory_space<vmem>>, vector<2x16x128xf32>
    tpu.vector_store %arg3[%c0_11, %c0_12, %c0_13], %30 {strides = array<i32>} : memref<2x16x128xf32, #tpu.memory_space<vmem>>, vector<2x16x128xf32>,
    return
  }
  func.func @transform_0(%arg0: i32) -> (i32, i32, i32) {
    %c0_i32 = arith.constant 0 : i32
    %c0_i32_0 = arith.constant 0 : i32
    %c0_i32_1 = arith.constant 0 : i32
    return %arg0, %c0_i32, %c0_i32_0 : i32, i32, i32
  }
  func.func @transform_1(%arg0: i32) -> (i32, i32) {
    %c0_i32 = arith.constant 0 : i32
    %c0_i32_0 = arith.constant 0 : i32
    %c0_i32_1 = arith.constant 0 : i32
    return %c0_i32, %c0_i32_0 : i32, i32
  }
  func.func @transform_2(%arg0: i32) -> (i32, i32, i32) {
    %c0_i32 = arith.constant 0 : i32
    %c0_i32_0 = arith.constant 0 : i32
    %c0_i32_1 = arith.constant 0 : i32
    return %arg0, %c0_i32, %c0_i32_0 : i32, i32, i32
  }
}

</mosaic_0001>

<llo_original>
// kernel: tpu_custom_call.1
$region0: #{tpu_custom_call.1}
  #allocation0 [shape = 'u32[]', space=smem, size = 0x4, offset = 0x4, fixed_abs, tag = 'smem constant byte address 0x4 - core index']
  #allocation1 [shape = 'u32[72,128]{1,0:T(1,128)}', space=vmem, size = 0x9000, scoped, tag = 'internal scratch']
  %s0 = inlined_call_operand.hbm [shape: f32[4,16,128], index: 0, kind: input, shape index: {}]
  %s1 = inlined_call_operand.hbm [shape: f32[1,128], index: 1, kind: input, shape index: {}]
  %s2 = inlined_call_operand.hbm [shape: f32[4,16,128], index: 2, kind: output, shape index: {}]
  %s3 = sld [smem:[#allocation0]]
  $region49: #{tpu_custom_call.1} parent=0
    _
  %s5 = ssub.s32 1, %s3
  %s6 = scalar_select 0, %s5, %s3
  $region1: #{tpu_custom_call.1} parent=0
    #allocation2 [shape = 'u8[32768]{0}', space=vmem, size = 0x8000, scoped, tag = 'input window, operand 0']
    #allocation3 [shape = 's32[2]{0}', space=sflag, size = 0x8, scoped, tag = 'scoped memory for tpu_custom_call.1']
    #allocation4 [shape = 's32[2]{0}', space=sflag, size = 0x8, scoped, tag = 'scoped memory for tpu_custom_call.1']
    #allocation5 [shape = 'u8[512]{0}', space=vmem, size = 0x400, scoped, tag = 'input window, operand 1, single buffered']
    #allocation6 [shape = 's32[1]{0}', space=sflag, size = 0x4, scoped, tag = 'scoped memory for tpu_custom_call.1']
    #allocation7 [shape = 'u8[32768]{0}', space=vmem, size = 0x8000, scoped, tag = 'output window, operand 0']
    %7 = vsyncpa [#allocation3], 0
    %s8 = scalar_lea.sflag [#allocation3], 1
    %9 = vsyncpa %s8, 0
    %10 = vsyncpa [#allocation6], 0
    %11 = vsyncpa [#allocation4], 0
    %s12 = scalar_lea.sflag [#allocation4], 1
    %13 = vsyncpa %s12, 0
    loop: start=0, step=1, limit=4
    $region2: #{tpu_custom_call.1} parent=1 // loop_pre_header
      _
    $region3: #{tpu_custom_call.1} parent=1 // loop_header
      %s15 = sphi 0, %s19
      %p16 = scmp.ge.s32.totalorder %s15, 4
      %s25 = sphi 0, %s27
      %s28 = sphi 0, %s25
      %s29 = sphi 0, %s28
      %s45 = sphi 0, %s29
      %s49 = sphi 0, %s49
      %s51 = sphi 0, %s49
      %s52 = sphi 0, %s51
      %s66 = sphi 0, %s52
      %s72 = sphi 0, %s74
      %s75 = sphi 0, %s72
      %s76 = sphi 0, %s75
      %s92 = sphi 0, %s76
    $region4: #{tpu_custom_call.1} parent=1 // loop_header_branch
      %18 = sbr.rel (%p16) target = $region8
    $region5: #{tpu_custom_call.1} parent=1 // loop_body
      %s20 = ssub.s32 %s15, 1
      %s21 = ssub.s32 %s15, 2
      %s22 = sadd.s32 %s15, 1
      %s23 = ssub.s32 %s15, %s22
      %p24 = scmp.eq.s32.totalorder %s23, 0
      %s26 = sadd.s32 %s25, 1
      %s27 = scalar_select %p24, %s25, %s26
      %p30 = pneg %p24
      %p31 = scmp.eq.s32.totalorder %s15, 1
      %p32 = por %p30, %p31
      %p33 = scmp.ne.s32.totalorder %s25, %s28
      %p34 = scmp.eq.s32.totalorder %s15, 0
      %p35 = por %p33, %p34
      %p36 = scmp.ne.s32.totalorder %s25, %s28
      %p37 = scmp.eq.s32.totalorder %s20, 1
      %p38 = por %p36, %p37
      %p39 = scmp.ne.s32.totalorder %s28, %s29
      %p40 = scmp.eq.s32.totalorder %s20, 0
      %p41 = por %p39, %p40
      %p42 = scmp.ne.s32.totalorder %s28, %s29
      %p43 = scmp.eq.s32.totalorder %s21, 1
      %p44 = por %p42, %p43
      %p46 = scmp.ne.s32.totalorder %s29, %s45
      %p47 = scmp.eq.s32.totalorder %s21, 0
      %p48 = por %p46, %p47
      %s50 = sadd.s32 %s49, 1
      %p53 = scmp.eq.s32.totalorder %s15, 1
      %p54 = scmp.ne.s32.totalorder %s49, %s51
      %p55 = scmp.eq.s32.totalorder %s15, 0
      %p56 = por %p54, %p55
      %p57 = scmp.ne.s32.totalorder %s49, %s51
      %p58 = scmp.eq.s32.totalorder %s20, 1
      %p59 = por %p57, %p58
      %p60 = scmp.ne.s32.totalorder %s51, %s52
      %p61 = scmp.eq.s32.totalorder %s20, 0
      %p62 = por %p60, %p61
      %p63 = scmp.ne.s32.totalorder %s51, %s52
      %p64 = scmp.eq.s32.totalorder %s21, 1
      %p65 = por %p63, %p64
      %p67 = scmp.ne.s32.totalorder %s52, %s66
      %p68 = scmp.eq.s32.totalorder %s21, 0
      %p69 = por %p67, %p68
      %s70 = ssub.s32 %s15, %s22
      %p71 = scmp.eq.s32.totalorder %s70, 0
      %s73 = sadd.s32 %s72, 1
      %s74 = scalar_select %p71, %s72, %s73
      %p77 = pneg %p71
      %p78 = scmp.eq.s32.totalorder %s15, 1
      %p79 = por %p77, %p78
      %p80 = scmp.ne.s32.totalorder %s72, %s75
      %p81 = scmp.eq.s32.totalorder %s15, 0
      %p82 = por %p80, %p81
      %p83 = scmp.ne.s32.totalorder %s72, %s75
      %p84 = scmp.eq.s32.totalorder %s20, 1
      %p85 = por %p83, %p84
      %p86 = scmp.ne.s32.totalorder %s75, %s76
      %p87 = scmp.eq.s32.totalorder %s20, 0
      %p88 = por %p86, %p87
      %p89 = scmp.ne.s32.totalorder %s75, %s76
      %p90 = scmp.eq.s32.totalorder %s21, 1
      %p91 = por %p89, %p90
      %p93 = scmp.ne.s32.totalorder %s76, %s92
      %p94 = scmp.eq.s32.totalorder %s21, 0
      %p95 = por %p93, %p94
      %p96 = scmp.le.s32.totalorder 1, %s15
      %p97 = scmp.lt.s32.totalorder %s15, 3
      %p98 = pnand %p96, %p97
      %p99 = pneg %p98
      // Predicated region
      $region9: #{tpu_custom_call.1} parent=5 // pred_check
        _
      $region10: #{tpu_custom_call.1} parent=5 // pred_check_branch
        %101 = sbr.rel (%p98) target = $region12
      $region11: #{tpu_custom_call.1} parent=5 // pred_region
        %s102 = ssub.s32 %s15, 1
        // Predicated region
        $region13: #{tpu_custom_call.1} parent=11 // pred_check
          %p103 = pneg %p62
        $region14: #{tpu_custom_call.1} parent=11 // pred_check_branch
          %105 = sbr.rel (%p103) target = $region16
        $region15: #{tpu_custom_call.1} parent=11 // pred_region
          %107 = vsyncadd [#allocation6], 0
          %s109 = sshll.u32 %s1, 4
          %s110 = int_to_ptr.hbm [resolvable:$true] %s109
          %s111 = sshll.u32 [#allocation5], 4
          %s112 = int_to_ptr.vmem [resolvable:$true] %s111
          %114 = dma.hbm_to_vmem [thread:$0]  %s110, 16, %s112, [#allocation6]
        $region16: #{tpu_custom_call.1} parent=11 // pred_fallthru
          _
      $region12: #{tpu_custom_call.1} parent=5 // pred_fallthru
        _
      %p115 = scmp.lt.s32.totalorder %s15, 2
      // Predicated region
      $region17: #{tpu_custom_call.1} parent=5 // pred_check
        %p116 = pneg %p115
      $region18: #{tpu_custom_call.1} parent=5 // pred_check_branch
        %118 = sbr.rel (%p116) target = $region20
      $region19: #{tpu_custom_call.1} parent=5 // pred_region
        // Predicated region
        $region21: #{tpu_custom_call.1} parent=19 // pred_check
          %p119 = pneg %p35
        $region22: #{tpu_custom_call.1} parent=19 // pred_check_branch
          %121 = sbr.rel (%p119) target = $region24
        $region23: #{tpu_custom_call.1} parent=19 // pred_region
          %s122 = sand.u32 %s25, 1
          %s123 = scalar_lea.sflag [#allocation3], %s122
          %s124 = sand.u32 %s25, 1
          %s125 = smul.addr %s124, 32
          %s126 = scalar_lea.vmem [#allocation2], %s125
          %s127 = smul.u32 2, %s15
          %129 = vsyncadd %s123, 0
          %s130 = smul.addr %s127, 2
          %s131 = smul.addr %s130, 8
          %s132 = scalar_lea.hbm %s0, %s131
          %s133 = sshll.u32 %s132, 4
          %s134 = int_to_ptr.hbm [resolvable:$true] %s133
          %s135 = sshll.u32 %s126, 4
          %s136 = int_to_ptr.vmem [resolvable:$true] %s135
          %141 = dma.hbm_to_vmem [thread:$0]  %s134, 512, %s136, %s123, 128, 128, 8
        $region24: #{tpu_custom_call.1} parent=19 // pred_fallthru
          _
      $region20: #{tpu_custom_call.1} parent=5 // pred_fallthru
        _
      %p142 = scmp.le.s32.totalorder 1, %s15
      %p143 = scmp.lt.s32.totalorder %s15, 3
      %p144 = pnand %p142, %p143
      %p145 = pneg %p144
      // Predicated region
      $region25: #{tpu_custom_call.1} parent=5 // pred_check
        _
      $region26: #{tpu_custom_call.1} parent=5 // pred_check_branch
        %147 = sbr.rel (%p144) target = $region28
      $region27: #{tpu_custom_call.1} parent=5 // pred_region
        %s148 = ssub.s32 %s15, 1
        %s149 = sand.u32 %s28, 1
        %s150 = scalar_lea.sflag [#allocation3], %s149
        %s151 = sand.u32 %s28, 1
        %s152 = smul.addr %s151, 32
        %s153 = scalar_lea.vmem [#allocation2], %s152
        // Predicated region
        $region29: #{tpu_custom_call.1} parent=27 // pred_check
          %p154 = pneg %p41
        $region30: #{tpu_custom_call.1} parent=27 // pred_check_branch
          %156 = sbr.rel (%p154) target = $region32
        $region31: #{tpu_custom_call.1} parent=27 // pred_region
          %158 = dma.done %s150, 512
        $region32: #{tpu_custom_call.1} parent=27 // pred_fallthru
          _
        // Predicated region
        $region33: #{tpu_custom_call.1} parent=27 // pred_check
          %p159 = pneg %p62
        $region34: #{tpu_custom_call.1} parent=27 // pred_check_branch
          %161 = sbr.rel (%p159) target = $region36
        $region35: #{tpu_custom_call.1} parent=27 // pred_region
          %163 = dma.done [#allocation6], 16
        $region36: #{tpu_custom_call.1} parent=27 // pred_fallthru
          _
        %s164 = sand.u32 %s28, 1
        %s165 = scalar_lea.sflag [#allocation3], %s164
        %s166 = sand.u32 %s28, 1
        %s167 = smul.addr %s166, 32
        %s168 = scalar_lea.vmem [#allocation2], %s167
        %p169 = pneg %p41
        %p170 = pneg %p38
        %p171 = pneg %p62
        %p172 = pneg %p59
        %p173 = pneg %p88
        %p174 = pneg %p85
        %s175 = sand.u32 %s75, 1
        %s176 = scalar_lea.sflag [#allocation4], %s175
        %s177 = sand.u32 %s75, 1
        %s178 = smul.addr %s177, 32
        %s179 = scalar_lea.vmem [#allocation7], %s178
        %s180 = smul.u32 2, %s20
        %s181 = smul.u32 2, %s20
        %v182 = vld [vmem:[%s153] sm:$0xff]
        %v183 = vld [vmem:[%s153 + $0x8] sm:$0xff]
        %v184 = vld [vmem:[%s153 + $0x10] sm:$0xff]
        %v185 = vld [vmem:[%s153 + $0x18] sm:$0xff]
        %186 = vadd.xlane.f32.xlu0 %v182
        %v187 = vpop.xlane.xlu0 %186
        %188 = vadd.xlane.f32.xlu0 %v183
        %v189 = vpop.xlane.xlu0 %188
        %190 = vadd.xlane.f32.xlu0 %v184
        %v191 = vpop.xlane.xlu0 %190
        %192 = vadd.xlane.f32.xlu0 %v185
        %v193 = vpop.xlane.xlu0 %192
        %v194 = vmul.f32 %v187, 0.0078125
        %v195 = vmul.f32 %v189, 0.0078125
        %v196 = vmul.f32 %v191, 0.0078125
        %v197 = vmul.f32 %v193, 0.0078125
        %v198 = vmul.f32 %v182, %v182
        %v199 = vmul.f32 %v183, %v183
        %v200 = vmul.f32 %v184, %v184
        %v201 = vmul.f32 %v185, %v185
        %202 = vadd.xlane.f32.xlu0 %v198
        %v203 = vpop.xlane.xlu0 %202
        %204 = vadd.xlane.f32.xlu0 %v199
        %v205 = vpop.xlane.xlu0 %204
        %206 = vadd.xlane.f32.xlu0 %v200
        %v207 = vpop.xlane.xlu0 %206
        %208 = vadd.xlane.f32.xlu0 %v201
        %v209 = vpop.xlane.xlu0 %208
        %v210 = vmul.f32 %v203, 0.0078125
        %v211 = vmul.f32 %v205, 0.0078125
        %v212 = vmul.f32 %v207, 0.0078125
        %v213 = vmul.f32 %v209, 0.0078125
        %v214 = vmul.f32 %v194, %v194
        %v215 = vmul.f32 %v195, %v195
        %v216 = vmul.f32 %v196, %v196
        %v217 = vmul.f32 %v197, %v197
        %v218 = vsub.f32 %v210, %v214
        %v219 = vsub.f32 %v211, %v215
        %v220 = vsub.f32 %v212, %v216
        %v221 = vsub.f32 %v213, %v217
        %v222 = vmax.f32 %v218, 0.0
        %v223 = vmax.f32 %v219, 0.0
        %v224 = vmax.f32 %v220, 0.0
        %v225 = vmax.f32 %v221, 0.0
        %v226 = vsub.f32 %v182, %v194
        %v227 = vsub.f32 %v183, %v195
        %v228 = vsub.f32 %v184, %v196
        %v229 = vsub.f32 %v185, %v197
        %v230 = vadd.f32 %v222, 1e-05
        %v231 = vadd.f32 %v223, 1e-05
        %v232 = vadd.f32 %v224, 1e-05
        %v233 = vadd.f32 %v225, 1e-05
        %v234 = vrsqrt.pop %v230
        %v235 = vmul.f32 %v234, %v230
        %v236 = vmul.f32 %v235, %v234
        %v237 = vmul.f32 0.5, %v236
        %v238 = vsub.f32 1.5, %v237
        %v239 = vmul.f32 %v234, %v238
        %vm240 = vweird.f32 %v230
        %vm241 = vweird.f32 %v234
        %vm242 = vmor %vm240, %vm241
        %v243 = vsel %vm242, %v234, %v239
        %v244 = vrsqrt.pop %v231
        %v245 = vmul.f32 %v244, %v231
        %v246 = vmul.f32 %v245, %v244
        %v247 = vmul.f32 0.5, %v246
        %v248 = vsub.f32 1.5, %v247
        %v249 = vmul.f32 %v244, %v248
        %vm250 = vweird.f32 %v231
        %vm251 = vweird.f32 %v244
        %vm252 = vmor %vm250, %vm251
        %v253 = vsel %vm252, %v244, %v249
        %v254 = vrsqrt.pop %v232
        %v255 = vmul.f32 %v254, %v232
        %v256 = vmul.f32 %v255, %v254
        %v257 = vmul.f32 0.5, %v256
        %v258 = vsub.f32 1.5, %v257
        %v259 = vmul.f32 %v254, %v258
        %vm260 = vweird.f32 %v232
        %vm261 = vweird.f32 %v254
        %vm262 = vmor %vm260, %vm261
        %v263 = vsel %vm262, %v254, %v259
        %v264 = vrsqrt.pop %v233
        %v265 = vmul.f32 %v264, %v233
        %v266 = vmul.f32 %v265, %v264
        %v267 = vmul.f32 0.5, %v266
        %v268 = vsub.f32 1.5, %v267
        %v269 = vmul.f32 %v264, %v268
        %vm270 = vweird.f32 %v233
        %vm271 = vweird.f32 %v264
        %vm272 = vmor %vm270, %vm271
        %v273 = vsel %vm272, %v264, %v269
        %v274 = vmul.f32 %v226, %v243
        %v275 = vmul.f32 %v227, %v253
        %v276 = vmul.f32 %v228, %v263
        %v277 = vmul.f32 %v229, %v273
        %v278 = vadd.f32 %v274, %v275
        %v279 = vrot.slane %v278, 4
        %v280 = vadd.f32 %v278, %v279
        %v281 = vrot.slane %v280, 2
        %v282 = vadd.f32 %v280, %v281
        %v283 = vrot.slane %v282, 1
        %v284 = vadd.f32 %v282, %v283
        %v285 = vadd.f32 %v276, %v277
        %v286 = vrot.slane %v285, 4
        %v287 = vadd.f32 %v285, %v286
        %v288 = vrot.slane %v287, 2
        %v289 = vadd.f32 %v287, %v288
        %v290 = vrot.slane %v289, 1
        %v291 = vadd.f32 %v289, %v290
        %v292 = vmul.f32 %v284, 0.0625
        %v293 = vmul.f32 %v291, 0.0625
        %v294 = vld [vmem:[#allocation5] sm:$0x1]
        %v295 = vsub.f32 %v274, %v292
        %v296 = vsub.f32 %v275, %v292
        %v297 = vsub.f32 %v276, %v293
        %v298 = vsub.f32 %v277, %v293
        %v300 = vperm.slane %v294, 0
        %v302 = vmul.f32 %v295, %v300
        %v303 = vmul.f32 %v296, %v300
        %v304 = vmul.f32 %v297, %v300
        %v305 = vmul.f32 %v298, %v300
        %306 = vst [vmem:[%s179] sm:$0xff] %v302
        %307 = vst [vmem:[%s179 + $0x8] sm:$0xff] %v303
        %308 = vst [vmem:[%s179 + $0x10] sm:$0xff] %v304
        %309 = vst [vmem:[%s179 + $0x18] sm:$0xff] %v305
        %s310 = sand.u32 %s75, 1
        %s311 = scalar_lea.sflag [#allocation4], %s310
        %s312 = sand.u32 %s75, 1
        %s313 = smul.addr %s312, 32
        %s314 = scalar_lea.vmem [#allocation7], %s313
        // Predicated region
        $region37: #{tpu_custom_call.1} parent=27 // pred_check
          %p315 = pneg %p85
        $region38: #{tpu_custom_call.1} parent=27 // pred_check_branch
          %317 = sbr.rel (%p315) target = $region40
        $region39: #{tpu_custom_call.1} parent=27 // pred_region
          %s318 = smul.u32 2, %s20
          %320 = vsyncadd %s311, 0
          %s321 = smul.addr %s318, 2
          %s322 = smul.addr %s321, 8
          %s323 = scalar_lea.hbm %s2, %s322
          %s324 = sshll.u32 %s314, 4
          %s325 = int_to_ptr.vmem [resolvable:$true] %s324
          %s326 = sshll.u32 %s323, 4
          %s327 = int_to_ptr.hbm [resolvable:$true] %s326
          %332 = dma.vmem_to_hbm [thread:$0]  %s325, 512, %s327, %s311, 128, 128, 8
        $region40: #{tpu_custom_call.1} parent=27 // pred_fallthru
          _
      $region28: #{tpu_custom_call.1} parent=5 // pred_fallthru
        _
      %p333 = scmp.le.s32.totalorder 2, %s15
      // Predicated region
      $region41: #{tpu_custom_call.1} parent=5 // pred_check
        %p334 = pneg %p333
      $region42: #{tpu_custom_call.1} parent=5 // pred_check_branch
        %336 = sbr.rel (%p334) target = $region44
      $region43: #{tpu_custom_call.1} parent=5 // pred_region
        %s337 = ssub.s32 %s15, 2
        // Predicated region
        $region45: #{tpu_custom_call.1} parent=43 // pred_check
          %p338 = pneg %p91
        $region46: #{tpu_custom_call.1} parent=43 // pred_check_branch
          %340 = sbr.rel (%p338) target = $region48
        $region47: #{tpu_custom_call.1} parent=43 // pred_region
          %s341 = sand.u32 %s76, 1
          %s342 = scalar_lea.sflag [#allocation4], %s341
          %s343 = sand.u32 %s76, 1
          %s344 = smul.addr %s343, 32
          %s345 = scalar_lea.vmem [#allocation7], %s344
          %347 = dma.done %s342, 512
        $region48: #{tpu_custom_call.1} parent=43 // pred_fallthru
          _
      $region44: #{tpu_custom_call.1} parent=5 // pred_fallthru
        _
    $region6: #{tpu_custom_call.1} parent=1 // loop_footer
      %s19 = sadd.s32 1, %s15
    $region7: #{tpu_custom_call.1} parent=1 // loop_footer_branch
      %14 = sbr.rel target = $region3
    $region8: #{tpu_custom_call.1} parent=1 // loop_exit
      _
    %348 = vsyncpa [#allocation3], 1
    %s349 = scalar_lea.sflag [#allocation3], 1
    %350 = vsyncpa %s349, 1
    %351 = vsyncpa [#allocation6], 1
    %352 = vsyncpa [#allocation4], 1
    %s353 = scalar_lea.sflag [#allocation4], 1
    %354 = vsyncpa %s353, 1

</llo_original>
